<compile_context>
chip_gen: v5e
topology: v5e:2x2
jax: 0.10.0
libtpu: 0.0.40
codegen_flags: <defaults>
</compile_context>

<pallas_src>
import jax
import jax.numpy as jnp
from jax.experimental import pallas as pl
from jax.experimental.pallas import tpu as pltpu

IN_FEATURES = 10
OUT_FEATURES = 2
MIN_PALLAS_ROWS = 65      # below this, plain XLA matmul wins
MAX_TILE_ROWS = 2048      # amortizes ~0.35 us/step grid overhead, tiny VMEM use


def _linear_kernel(x_ref, w_ref, b_ref, o_ref):
    """o = x @ w + b   (one MXU pass per tile, f32 accumulation).

    x_ref: (tile_b, K)   activation tile
    w_ref: (K, N)        pre-transposed weight (constant block, DMA'd once)
    b_ref: (1, N)        bias row
    o_ref: (tile_b, N)   narrow output tile
    """
    y = jnp.dot(x_ref[...], w_ref[...], preferred_element_type=jnp.float32)
    y = y + b_ref[...]                      # (1, N) sublane-broadcast add
    o_ref[...] = y.astype(o_ref.dtype)


def _choose_tile(batch):
    """Large fixed tile; capped so the grid has >= 2 blocks (v7x has 2 TCs)."""
    if batch > MAX_TILE_ROWS:
        return MAX_TILE_ROWS
    half = -(-batch // 2)                   # ceil(batch / 2)
    return max(8, ((half + 7) // 8) * 8)    # sublane-aligned


def _linear_pallas_call(x, w_t, b_row):
    """x: (B, K) f32; w_t: (K, N); b_row: (1, N). Returns (B, N)."""
    B, K = x.shape
    _, N = w_t.shape

    tile_b = _choose_tile(B)
    n_blocks = pl.cdiv(B, tile_b)
    B_pad = n_blocks * tile_b
    if B_pad != B:
        x = jnp.pad(x, ((0, B_pad - B), (0, 0)))

    out = pl.pallas_call(
        _linear_kernel,
        out_shape=jax.ShapeDtypeStruct((B_pad, N), x.dtype),
        grid=(n_blocks,),
        in_specs=[
            pl.BlockSpec((tile_b, K), lambda i: (i, 0)),
            pl.BlockSpec((K, N), lambda i: (0, 0)),
            pl.BlockSpec((1, N), lambda i: (0, 0)),
        ],
        out_specs=pl.BlockSpec((tile_b, N), lambda i: (i, 0)),
        compiler_params=pltpu.CompilerParams(
            dimension_semantics=("parallel",)),
    )(x, w_t, b_row)

    if B_pad != B:
        out = out[:B]
    return out


def linear(x, w_t, b_row):
    """Dispatch: tiny batches stay in plain XLA, larger ones go to Pallas."""
    if x.shape[0] < MIN_PALLAS_ROWS:
        return x @ w_t + b_row
    return _linear_pallas_call(x, w_t, b_row)


def prepare_linear_params(w, b):
    """One-time prep: transpose torch-style (out, in) weight, 2-D bias row."""
    return w.T, b.reshape(1, -1)


def init_linear_params(key, in_features, out_features, dtype=jnp.float32):
    """Matches torch.nn.Linear default init: U(-1/sqrt(K), 1/sqrt(K))."""
    kw, kb = jax.random.split(key)
    bound = 1.0 / (in_features ** 0.5)
    w = jax.random.uniform(kw, (out_features, in_features), dtype,
                           minval=-bound, maxval=bound)
    b = jax.random.uniform(kb, (out_features,), dtype,
                           minval=-bound, maxval=bound)
    return w, b


def model_forward(w_t, b_row, x1):
    # t1 = self.layer1(x1)
    t1 = linear(x1, w_t, b_row)
    # TODO(synk): the reference then calls self.layer1(torch.rand((B, 4))),
    # which is a 4-vs-10 feature mismatch and raises inside PyTorch itself;
    # there is no valid semantics to reproduce, so we return t1 (the last
    # valid value) and do not emit the dead torch.rand.
    return t1


if __name__ == "__main__":
    key = jax.random.PRNGKey(0)
    k_param, k_small, k_big = jax.random.split(key, 3)

    w, b = init_linear_params(k_param, IN_FEATURES, OUT_FEATURES)
    w_t, b_row = prepare_linear_params(w, b)

    # 1) Module-sized input (tiny batch -> fused XLA path, as per perf review).
    x1 = jax.random.uniform(k_small, (2, IN_FEATURES), dtype=jnp.float32)
    t1 = model_forward(w_t, b_row, x1)
    jax.block_until_ready(t1)
    assert t1.shape == (2, OUT_FEATURES)
    assert jnp.allclose(t1, x1 @ w.T + b, atol=1e-5, rtol=1e-5)

    # 2) Exercise and verify the Pallas kernel at a batch where it pays off.
    x_big = jax.random.uniform(k_big, (1024, IN_FEATURES), dtype=jnp.float32)
    out_big = _linear_pallas_call(x_big, w_t, b_row)
    jax.block_until_ready(out_big)
    ref_big = x_big @ w.T + b
    assert out_big.shape == (1024, OUT_FEATURES)
    assert jnp.allclose(out_big, ref_big, atol=1e-5, rtol=1e-5), \
        "pallas linear mismatch vs reference"

    print("KERNEL_OK")
</pallas_src>

<mosaic_0001>
module attributes {stable_mosaic.version = 11 : i64} {
  func.func @_linear_kernel(%arg0: i32, %arg1: memref<512x10xf32, #tpu.memory_space<vmem>>, %arg2: memref<10x2xf32, #tpu.memory_space<vmem>>, %arg3: memref<1x2xf32, #tpu.memory_space<vmem>>, %arg4: memref<512x2xf32, #tpu.memory_space<vmem>>) attributes {dimension_semantics = [#tpu.dimension_semantics<parallel>], iteration_bounds = array<i64: 2>, scalar_prefetch = 0 : i64, scratch_operands = 0 : i64, tpu.core_type = #tpu.core_type<tc>, window_params = [{transform_indices = @transform_0, window_bounds = array<i64: 512, 10>}, {pipeline_mode = #tpu.pipeline_mode<synchronous>, transform_indices = @transform_1, window_bounds = array<i64: 10, 2>}, {pipeline_mode = #tpu.pipeline_mode<synchronous>, transform_indices = @transform_2, window_bounds = array<i64: 1, 2>}, {transform_indices = @transform_3, window_bounds = array<i64: 512, 2>}]} {
    %c0 = arith.constant 0 : index
    %c0_0 = arith.constant 0 : index
    %0 = vector.load %arg1[%c0, %c0_0] : memref<512x10xf32, #tpu.memory_space<vmem>>, vector<512x10xf32>
    %c0_1 = arith.constant 0 : index
    %c0_2 = arith.constant 0 : index
    %1 = vector.load %arg2[%c0_1, %c0_2] : memref<10x2xf32, #tpu.memory_space<vmem>>, vector<10x2xf32>
    %cst = arith.constant dense<0.000000e+00> : vector<512x2xf32>
    %2 = tpu.matmul %0, %1, %cst {dimension_numbers = #tpu.dot_dimension_numbers<[1], [0], [0], [1], [0, 0, 1, 1], [], []>} : vector<512x10xf32>, vector<10x2xf32>, vector<512x2xf32> -> vector<512x2xf32>
    %c0_3 = arith.constant 0 : index
    %c0_4 = arith.constant 0 : index
    %3 = vector.load %arg3[%c0_3, %c0_4] : memref<1x2xf32, #tpu.memory_space<vmem>>, vector<1x2xf32>
    %4 = vector.broadcast %3 : vector<1x2xf32> to vector<512x2xf32>
    %5 = arith.addf %2, %4 : vector<512x2xf32>
    %c0_5 = arith.constant 0 : index
    %c0_6 = arith.constant 0 : index
    %6 = vector.load %arg4[%c0_5, %c0_6] : memref<512x2xf32, #tpu.memory_space<vmem>>, vector<512x2xf32>
    tpu.vector_store %arg4[%c0_5, %c0_6], %5 {strides = array<i32>} : memref<512x2xf32, #tpu.memory_space<vmem>>, vector<512x2xf32>,
    return
  }
  func.func @transform_0(%arg0: i32) -> (i32, i32) {
    %c0_i32 = arith.constant 0 : i32
    %c0_i32_0 = arith.constant 0 : i32
    return %arg0, %c0_i32 : i32, i32
  }
  func.func @transform_1(%arg0: i32) -> (i32, i32) {
    %c0_i32 = arith.constant 0 : i32
    %c0_i32_0 = arith.constant 0 : i32
    %c0_i32_1 = arith.constant 0 : i32
    return %c0_i32, %c0_i32_0 : i32, i32
  }
  func.func @transform_2(%arg0: i32) -> (i32, i32) {
    %c0_i32 = arith.constant 0 : i32
    %c0_i32_0 = arith.constant 0 : i32
    %c0_i32_1 = arith.constant 0 : i32
    return %c0_i32, %c0_i32_0 : i32, i32
  }
  func.func @transform_3(%arg0: i32) -> (i32, i32) {
    %c0_i32 = arith.constant 0 : i32
    %c0_i32_0 = arith.constant 0 : i32
    return %arg0, %c0_i32 : i32, i32
  }
}

</mosaic_0001>

<llo_original>
// kernel: tpu_custom_call.1
$region0: #{tpu_custom_call.1}
  #allocation0 [shape = 'u32[]', space=smem, size = 0x4, offset = 0x4, fixed_abs, tag = 'smem constant byte address 0x4 - core index']
  #allocation1 [shape = 'u32[72,128]{1,0:T(1,128)}', space=vmem, size = 0x9000, scoped, tag = 'internal scratch']
  %s0 = inlined_call_operand.vmem [shape: f32[1024,10], index: 0, kind: input, shape index: {}]
  %s1 = inlined_call_operand.vmem [shape: f32[10,2], index: 1, kind: input, shape index: {}]
  %s2 = inlined_call_operand.vmem [shape: f32[1,2], index: 2, kind: input, shape index: {}]
  %s3 = inlined_call_operand.vmem [shape: f32[1024,2], index: 3, kind: output, shape index: {}]
  %s4 = sld [smem:[#allocation0]]
  $region45: #{tpu_custom_call.1} parent=0
    _
  %s6 = ssub.s32 1, %s4
  %s7 = scalar_select 0, %s6, %s4
  loop: start=0, step=1, limit=4
  $region2: #{tpu_custom_call.1} parent=0 // loop_pre_header
    _
  $region3: #{tpu_custom_call.1} parent=0 // loop_header
    %s9 = sphi 0, %s13
    %p10 = scmp.ge.s32.totalorder %s9, 4
    %s19 = sphi 0, %s21
    %s22 = sphi 0, %s19
    %s23 = sphi 0, %s22
    %s39 = sphi 0, %s23
    %s43 = sphi 0, %s43
    %s45 = sphi 0, %s43
    %s46 = sphi 0, %s45
    %s60 = sphi 0, %s46
    %s64 = sphi 0, %s64
    %s66 = sphi 0, %s64
    %s67 = sphi 0, %s66
    %s81 = sphi 0, %s67
    %s87 = sphi 0, %s89
    %s90 = sphi 0, %s87
    %s91 = sphi 0, %s90
    %s107 = sphi 0, %s91
  $region4: #{tpu_custom_call.1} parent=0 // loop_header_branch
    %12 = sbr.rel (%p10) target = $region8
  $region5: #{tpu_custom_call.1} parent=0 // loop_body
    %s14 = ssub.s32 %s9, 1
    %s15 = ssub.s32 %s9, 2
    %s16 = sadd.s32 %s9, 1
    %s17 = ssub.s32 %s9, %s16
    %p18 = scmp.eq.s32.totalorder %s17, 0
    %s20 = sadd.s32 %s19, 1
    %s21 = scalar_select %p18, %s19, %s20
    %p24 = pneg %p18
    %p25 = scmp.eq.s32.totalorder %s9, 1
    %p26 = por %p24, %p25
    %p27 = scmp.ne.s32.totalorder %s19, %s22
    %p28 = scmp.eq.s32.totalorder %s9, 0
    %p29 = por %p27, %p28
    %p30 = scmp.ne.s32.totalorder %s19, %s22
    %p31 = scmp.eq.s32.totalorder %s14, 1
    %p32 = por %p30, %p31
    %p33 = scmp.ne.s32.totalorder %s22, %s23
    %p34 = scmp.eq.s32.totalorder %s14, 0
    %p35 = por %p33, %p34
    %p36 = scmp.ne.s32.totalorder %s22, %s23
    %p37 = scmp.eq.s32.totalorder %s15, 1
    %p38 = por %p36, %p37
    %p40 = scmp.ne.s32.totalorder %s23, %s39
    %p41 = scmp.eq.s32.totalorder %s15, 0
    %p42 = por %p40, %p41
    %s44 = sadd.s32 %s43, 1
    %p47 = scmp.eq.s32.totalorder %s9, 1
    %p48 = scmp.ne.s32.totalorder %s43, %s45
    %p49 = scmp.eq.s32.totalorder %s9, 0
    %p50 = por %p48, %p49
    %p51 = scmp.ne.s32.totalorder %s43, %s45
    %p52 = scmp.eq.s32.totalorder %s14, 1
    %p53 = por %p51, %p52
    %p54 = scmp.ne.s32.totalorder %s45, %s46
    %p55 = scmp.eq.s32.totalorder %s14, 0
    %p56 = por %p54, %p55
    %p57 = scmp.ne.s32.totalorder %s45, %s46
    %p58 = scmp.eq.s32.totalorder %s15, 1
    %p59 = por %p57, %p58
    %p61 = scmp.ne.s32.totalorder %s46, %s60
    %p62 = scmp.eq.s32.totalorder %s15, 0
    %p63 = por %p61, %p62
    %s65 = sadd.s32 %s64, 1
    %p68 = scmp.eq.s32.totalorder %s9, 1
    %p69 = scmp.ne.s32.totalorder %s64, %s66
    %p70 = scmp.eq.s32.totalorder %s9, 0
    %p71 = por %p69, %p70
    %p72 = scmp.ne.s32.totalorder %s64, %s66
    %p73 = scmp.eq.s32.totalorder %s14, 1
    %p74 = por %p72, %p73
    %p75 = scmp.ne.s32.totalorder %s66, %s67
    %p76 = scmp.eq.s32.totalorder %s14, 0
    %p77 = por %p75, %p76
    %p78 = scmp.ne.s32.totalorder %s66, %s67
    %p79 = scmp.eq.s32.totalorder %s15, 1
    %p80 = por %p78, %p79
    %p82 = scmp.ne.s32.totalorder %s67, %s81
    %p83 = scmp.eq.s32.totalorder %s15, 0
    %p84 = por %p82, %p83
    %s85 = ssub.s32 %s9, %s16
    %p86 = scmp.eq.s32.totalorder %s85, 0
    %s88 = sadd.s32 %s87, 1
    %s89 = scalar_select %p86, %s87, %s88
    %p92 = pneg %p86
    %p93 = scmp.eq.s32.totalorder %s9, 1
    %p94 = por %p92, %p93
    %p95 = scmp.ne.s32.totalorder %s87, %s90
    %p96 = scmp.eq.s32.totalorder %s9, 0
    %p97 = por %p95, %p96
    %p98 = scmp.ne.s32.totalorder %s87, %s90
    %p99 = scmp.eq.s32.totalorder %s14, 1
    %p100 = por %p98, %p99
    %p101 = scmp.ne.s32.totalorder %s90, %s91
    %p102 = scmp.eq.s32.totalorder %s14, 0
    %p103 = por %p101, %p102
    %p104 = scmp.ne.s32.totalorder %s90, %s91
    %p105 = scmp.eq.s32.totalorder %s15, 1
    %p106 = por %p104, %p105
    %p108 = scmp.ne.s32.totalorder %s91, %s107
    %p109 = scmp.eq.s32.totalorder %s15, 0
    %p110 = por %p108, %p109
    %p111 = scmp.le.s32.totalorder 1, %s9
    %p112 = scmp.lt.s32.totalorder %s9, 3
    %p113 = pnand %p111, %p112
    %p114 = pneg %p113
    // Predicated region
    $region9: #{tpu_custom_call.1} parent=5 // pred_check
      _
    $region10: #{tpu_custom_call.1} parent=5 // pred_check_branch
      %116 = sbr.rel (%p113) target = $region12
    $region11: #{tpu_custom_call.1} parent=5 // pred_region
      %s117 = ssub.s32 %s9, 1
      // Predicated region
      $region13: #{tpu_custom_call.1} parent=11 // pred_check
        %p118 = pneg %p56
      $region14: #{tpu_custom_call.1} parent=11 // pred_check_branch
        %120 = sbr.rel (%p118) target = $region16
      $region15: #{tpu_custom_call.1} parent=11 // pred_region
        _
      $region16: #{tpu_custom_call.1} parent=11 // pred_fallthru
        _
      // Predicated region
      $region17: #{tpu_custom_call.1} parent=11 // pred_check
        %p121 = pneg %p77
      $region18: #{tpu_custom_call.1} parent=11 // pred_check_branch
        %123 = sbr.rel (%p121) target = $region20
      $region19: #{tpu_custom_call.1} parent=11 // pred_region
        _
      $region20: #{tpu_custom_call.1} parent=11 // pred_fallthru
        _
    $region12: #{tpu_custom_call.1} parent=5 // pred_fallthru
      _
    %p124 = scmp.lt.s32.totalorder %s9, 2
    // Predicated region
    $region21: #{tpu_custom_call.1} parent=5 // pred_check
      %p125 = pneg %p124
    $region22: #{tpu_custom_call.1} parent=5 // pred_check_branch
      %127 = sbr.rel (%p125) target = $region24
    $region23: #{tpu_custom_call.1} parent=5 // pred_region
      // Predicated region
      $region25: #{tpu_custom_call.1} parent=23 // pred_check
        %p128 = pneg %p29
      $region26: #{tpu_custom_call.1} parent=23 // pred_check_branch
        %130 = sbr.rel (%p128) target = $region28
      $region27: #{tpu_custom_call.1} parent=23 // pred_region
        %s131 = smul.u32 64, %s9
        %p132 = scmp.lt.s32.totalorder %s131, 127
        %s133 = scalar_select %p132, %s131, 127
        %s134 = smul.addr %s133, 8
        %s135 = scalar_lea.vmem %s0, %s134
        %s136 = smul.u32 64, %s9
      $region28: #{tpu_custom_call.1} parent=23 // pred_fallthru
        _
    $region24: #{tpu_custom_call.1} parent=5 // pred_fallthru
      _
    %p137 = scmp.le.s32.totalorder 1, %s9
    %p138 = scmp.lt.s32.totalorder %s9, 3
    %p139 = pnand %p137, %p138
    %p140 = pneg %p139
    // Predicated region
    $region29: #{tpu_custom_call.1} parent=5 // pred_check
      _
    $region30: #{tpu_custom_call.1} parent=5 // pred_check_branch
      %142 = sbr.rel (%p139) target = $region32
    $region31: #{tpu_custom_call.1} parent=5 // pred_region
      %s143 = ssub.s32 %s9, 1
      %s144 = smul.u32 64, %s14
      %p145 = scmp.lt.s32.totalorder %s144, 127
      %s146 = scalar_select %p145, %s144, 127
      %s147 = smul.addr %s146, 8
      %s148 = scalar_lea.vmem %s0, %s147
      %p149 = pneg %p35
      %p150 = pneg %p32
      %p151 = pneg %p56
      %p152 = pneg %p53
      %p153 = pneg %p77
      %p154 = pneg %p74
      %p155 = pneg %p103
      %p156 = pneg %p100
      %s157 = smul.u32 64, %s14
      %p158 = scmp.lt.s32.totalorder %s157, 127
      %s159 = scalar_select %p158, %s157, 127
      %s160 = smul.addr %s159, 8
      %s161 = scalar_lea.vmem %s3, %s160
      %s162 = smul.u32 64, %s14
      %p163 = scmp.lt.s32.totalorder %s162, 127
      %s164 = scalar_select %p163, %s162, 127
      %s165 = smul.addr %s164, 8
      %s166 = scalar_lea.vmem %s0, %s165
      %s167 = smul.u32 64, %s14
      %s168 = smul.u32 64, %s14
      %p169 = scmp.lt.s32.totalorder %s168, 127
      %s170 = scalar_select %p169, %s168, 127
      %s171 = smul.addr %s170, 8
      %s172 = scalar_lea.vmem %s3, %s171
      %s173 = smul.u32 64, %s14
      %v174 = vld [vmem:[%s166] sm:$0xff]
      %v175 = vld [vmem:[%s166 + $0x8] sm:$0xff]
      %v176 = vld [vmem:[%s166 + $0x10] sm:$0xff]
      %v177 = vld [vmem:[%s166 + $0x18] sm:$0xff]
      %v178 = vld [vmem:[%s166 + $0x20] sm:$0xff]
      %v179 = vld [vmem:[%s166 + $0x28] sm:$0xff]
      %v180 = vld [vmem:[%s166 + $0x30] sm:$0xff]
      %v181 = vld [vmem:[%s166 + $0x38] sm:$0xff]
      %v182 = vld [vmem:[%s166 + $0x40] sm:$0xff]
      %v183 = vld [vmem:[%s166 + $0x48] sm:$0xff]
      %v184 = vld [vmem:[%s166 + $0x50] sm:$0xff]
      %v185 = vld [vmem:[%s166 + $0x58] sm:$0xff]
      %v186 = vld [vmem:[%s166 + $0x60] sm:$0xff]
      %v187 = vld [vmem:[%s166 + $0x68] sm:$0xff]
      %v188 = vld [vmem:[%s166 + $0x70] sm:$0xff]
      %v189 = vld [vmem:[%s166 + $0x78] sm:$0xff]
      %v190 = vld [vmem:[%s166 + $0x80] sm:$0xff]
      %v191 = vld [vmem:[%s166 + $0x88] sm:$0xff]
      %v192 = vld [vmem:[%s166 + $0x90] sm:$0xff]
      %v193 = vld [vmem:[%s166 + $0x98] sm:$0xff]
      %v194 = vld [vmem:[%s166 + $0xa0] sm:$0xff]
      %v195 = vld [vmem:[%s166 + $0xa8] sm:$0xff]
      %v196 = vld [vmem:[%s166 + $0xb0] sm:$0xff]
      %v197 = vld [vmem:[%s166 + $0xb8] sm:$0xff]
      %v198 = vld [vmem:[%s166 + $0xc0] sm:$0xff]
      %v199 = vld [vmem:[%s166 + $0xc8] sm:$0xff]
      %v200 = vld [vmem:[%s166 + $0xd0] sm:$0xff]
      %v201 = vld [vmem:[%s166 + $0xd8] sm:$0xff]
      %v202 = vld [vmem:[%s166 + $0xe0] sm:$0xff]
      %v203 = vld [vmem:[%s166 + $0xe8] sm:$0xff]
      %v204 = vld [vmem:[%s166 + $0xf0] sm:$0xff]
      %v205 = vld [vmem:[%s166 + $0xf8] sm:$0xff]
      %v206 = vld [vmem:[%s166 + $0x100] sm:$0xff]
      %v207 = vld [vmem:[%s166 + $0x108] sm:$0xff]
      %v208 = vld [vmem:[%s166 + $0x110] sm:$0xff]
      %v209 = vld [vmem:[%s166 + $0x118] sm:$0xff]
      %v210 = vld [vmem:[%s166 + $0x120] sm:$0xff]
      %v211 = vld [vmem:[%s166 + $0x128] sm:$0xff]
      %v212 = vld [vmem:[%s166 + $0x130] sm:$0xff]
      %v213 = vld [vmem:[%s166 + $0x138] sm:$0xff]
      %v214 = vld [vmem:[%s166 + $0x140] sm:$0xff]
      %v215 = vld [vmem:[%s166 + $0x148] sm:$0xff]
      %v216 = vld [vmem:[%s166 + $0x150] sm:$0xff]
      %v217 = vld [vmem:[%s166 + $0x158] sm:$0xff]
      %v218 = vld [vmem:[%s166 + $0x160] sm:$0xff]
      %v219 = vld [vmem:[%s166 + $0x168] sm:$0xff]
      %v220 = vld [vmem:[%s166 + $0x170] sm:$0xff]
      %v221 = vld [vmem:[%s166 + $0x178] sm:$0xff]
      %v222 = vld [vmem:[%s166 + $0x180] sm:$0xff]
      %v223 = vld [vmem:[%s166 + $0x188] sm:$0xff]
      %v224 = vld [vmem:[%s166 + $0x190] sm:$0xff]
      %v225 = vld [vmem:[%s166 + $0x198] sm:$0xff]
      %v226 = vld [vmem:[%s166 + $0x1a0] sm:$0xff]
      %v227 = vld [vmem:[%s166 + $0x1a8] sm:$0xff]
      %v228 = vld [vmem:[%s166 + $0x1b0] sm:$0xff]
      %v229 = vld [vmem:[%s166 + $0x1b8] sm:$0xff]
      %v230 = vld [vmem:[%s166 + $0x1c0] sm:$0xff]
      %v231 = vld [vmem:[%s166 + $0x1c8] sm:$0xff]
      %v232 = vld [vmem:[%s166 + $0x1d0] sm:$0xff]
      %v233 = vld [vmem:[%s166 + $0x1d8] sm:$0xff]
      %v234 = vld [vmem:[%s166 + $0x1e0] sm:$0xff]
      %v235 = vld [vmem:[%s166 + $0x1e8] sm:$0xff]
      %v236 = vld [vmem:[%s166 + $0x1f0] sm:$0xff]
      %v237 = vld [vmem:[%s166 + $0x1f8] sm:$0xff]
      %v238 = vld [vmem:[%s1] sm:$0xff]
      %v239 = vld [vmem:[%s1 + $0x8] sm:$0x3]
      %v240 = vld [vmem:[%s2] sm:$0x1]
      %v242 = vperm.slane %v240, 0
      %vm244 = vcmask 80896
      %v246 = vsel %vm244, %v174, 0
      %v249 = vsel %vm244, %v175, 0
      %v252 = vsel %vm244, %v176, 0
      %v255 = vsel %vm244, %v177, 0
      %v258 = vsel %vm244, %v178, 0
      %v261 = vsel %vm244, %v179, 0
      %v264 = vsel %vm244, %v180, 0
      %v267 = vsel %vm244, %v181, 0
      %v270 = vsel %vm244, %v182, 0
      %v273 = vsel %vm244, %v183, 0
      %v276 = vsel %vm244, %v184, 0
      %v279 = vsel %vm244, %v185, 0
      %v282 = vsel %vm244, %v186, 0
      %v285 = vsel %vm244, %v187, 0
      %v288 = vsel %vm244, %v188, 0
      %v291 = vsel %vm244, %v189, 0
      %v294 = vsel %vm244, %v190, 0
      %v297 = vsel %vm244, %v191, 0
      %v300 = vsel %vm244, %v192, 0
      %v303 = vsel %vm244, %v193, 0
      %v306 = vsel %vm244, %v194, 0
      %v309 = vsel %vm244, %v195, 0
      %v312 = vsel %vm244, %v196, 0
      %v315 = vsel %vm244, %v197, 0
      %v318 = vsel %vm244, %v198, 0
      %v321 = vsel %vm244, %v199, 0
      %v324 = vsel %vm244, %v200, 0
      %v327 = vsel %vm244, %v201, 0
      %v330 = vsel %vm244, %v202, 0
      %v333 = vsel %vm244, %v203, 0
      %v336 = vsel %vm244, %v204, 0
      %v339 = vsel %vm244, %v205, 0
      %v342 = vsel %vm244, %v206, 0
      %v345 = vsel %vm244, %v207, 0
      %v348 = vsel %vm244, %v208, 0
      %v351 = vsel %vm244, %v209, 0
      %v354 = vsel %vm244, %v210, 0
      %v357 = vsel %vm244, %v211, 0
      %v360 = vsel %vm244, %v212, 0
      %v363 = vsel %vm244, %v213, 0
      %v366 = vsel %vm244, %v214, 0
      %v369 = vsel %vm244, %v215, 0
      %v372 = vsel %vm244, %v216, 0
      %v375 = vsel %vm244, %v217, 0
      %v378 = vsel %vm244, %v218, 0
      %v381 = vsel %vm244, %v219, 0
      %v384 = vsel %vm244, %v220, 0
      %v387 = vsel %vm244, %v221, 0
      %v390 = vsel %vm244, %v222, 0
      %v393 = vsel %vm244, %v223, 0
      %v396 = vsel %vm244, %v224, 0
      %v399 = vsel %vm244, %v225, 0
      %v402 = vsel %vm244, %v226, 0
      %v405 = vsel %vm244, %v227, 0
      %v408 = vsel %vm244, %v228, 0
      %v411 = vsel %vm244, %v229, 0
      %v414 = vsel %vm244, %v230, 0
      %v417 = vsel %vm244, %v231, 0
      %v420 = vsel %vm244, %v232, 0
      %v423 = vsel %vm244, %v233, 0
      %v426 = vsel %vm244, %v234, 0
      %v429 = vsel %vm244, %v235, 0
      %v432 = vsel %vm244, %v236, 0
      %v435 = vsel %vm244, %v237, 0
      %vm437 = vcmask 1041408
      %v439 = vsel %vm437, %v239, 0
      %441 = vmatpush.msra.mxu0 0.0
      %442 = vmatpush.msra.mxu0 0.0
      %443 = vmatpush.msra.mxu0 0.0
      %444 = vmatpush.msra.mxu0 0.0
      %445 = vmatpush.msra.mxu0 0.0
      %446 = vmatpush.msra.mxu0 0.0
      %447 = vmatpush.msra.mxu0 0.0
      %448 = vmatpush.msra.mxu0 0.0
      %449 = vmatpush.msra.mxu0 0.0
      %450 = vmatpush.msra.mxu0 0.0
      %451 = vmatpush.msra.mxu0 0.0
      %452 = vmatpush.msra.mxu0 0.0
      %453 = vmatpush.msra.mxu0 0.0
      %454 = vmatpush.msra.mxu0 0.0
      %455 = vmatpush.msra.mxu0 %v439
      %456 = vmatpush.msra.mxu0 %v238
      %457 = vmatmul.f32.gmra.mxu0 %v246
      %v458 = vpop.f32.mrf.mxu0
      %v459 = vadd.f32 %v242, %v458
      %460 = vmatmul.f32.gmra.mxu0 %v249
      %v461 = vpop.f32.mrf.mxu0
      %v462 = vadd.f32 %v242, %v461
      %463 = vmatmul.f32.gmra.mxu0 %v252
      %v464 = vpop.f32.mrf.mxu0
      %v465 = vadd.f32 %v242, %v464
      %466 = vmatmul.f32.gmra.mxu0 %v255
      %v467 = vpop.f32.mrf.mxu0
      %v468 = vadd.f32 %v242, %v467
      %469 = vmatmul.f32.gmra.mxu0 %v258
      %v470 = vpop.f32.mrf.mxu0
      %v471 = vadd.f32 %v242, %v470
      %472 = vmatmul.f32.gmra.mxu0 %v261
      %v473 = vpop.f32.mrf.mxu0
      %v474 = vadd.f32 %v242, %v473
      %475 = vmatmul.f32.gmra.mxu0 %v264
      %v476 = vpop.f32.mrf.mxu0
      %v477 = vadd.f32 %v242, %v476
      %478 = vmatmul.f32.gmra.mxu0 %v267
      %v479 = vpop.f32.mrf.mxu0
      %v480 = vadd.f32 %v242, %v479
      %481 = vmatmul.f32.gmra.mxu0 %v270
      %v482 = vpop.f32.mrf.mxu0
      %v483 = vadd.f32 %v242, %v482
      %484 = vmatmul.f32.gmra.mxu0 %v273
      %v485 = vpop.f32.mrf.mxu0
      %v486 = vadd.f32 %v242, %v485
      %487 = vmatmul.f32.gmra.mxu0 %v276
      %v488 = vpop.f32.mrf.mxu0
      %v489 = vadd.f32 %v242, %v488
      %490 = vmatmul.f32.gmra.mxu0 %v279
      %v491 = vpop.f32.mrf.mxu0
      %v492 = vadd.f32 %v242, %v491
      %493 = vmatmul.f32.gmra.mxu0 %v282
      %v494 = vpop.f32.mrf.mxu0
      %v495 = vadd.f32 %v242, %v494
      %496 = vmatmul.f32.gmra.mxu0 %v285
      %v497 = vpop.f32.mrf.mxu0
      %v498 = vadd.f32 %v242, %v497
      %499 = vmatmul.f32.gmra.mxu0 %v288
      %v500 = vpop.f32.mrf.mxu0
      %v501 = vadd.f32 %v242, %v500
      %502 = vmatmul.f32.gmra.mxu0 %v291
      %v503 = vpop.f32.mrf.mxu0
      %v504 = vadd.f32 %v242, %v503
      %505 = vmatmul.f32.gmra.mxu0 %v294
      %v506 = vpop.f32.mrf.mxu0
      %v507 = vadd.f32 %v242, %v506
      %508 = vmatmul.f32.gmra.mxu0 %v297
      %v509 = vpop.f32.mrf.mxu0
      %v510 = vadd.f32 %v242, %v509
      %511 = vmatmul.f32.gmra.mxu0 %v300
      %v512 = vpop.f32.mrf.mxu0
      %v513 = vadd.f32 %v242, %v512
      %514 = vmatmul.f32.gmra.mxu0 %v303
      %v515 = vpop.f32.mrf.mxu0
      %v516 = vadd.f32 %v242, %v515
      %517 = vmatmul.f32.gmra.mxu0 %v306
      %v518 = vpop.f32.mrf.mxu0
      %v519 = vadd.f32 %v242, %v518
      %520 = vmatmul.f32.gmra.mxu0 %v309
      %v521 = vpop.f32.mrf.mxu0
      %v522 = vadd.f32 %v242, %v521
      %523 = vmatmul.f32.gmra.mxu0 %v312
      %v524 = vpop.f32.mrf.mxu0
      %v525 = vadd.f32 %v242, %v524
      %526 = vmatmul.f32.gmra.mxu0 %v315
      %v527 = vpop.f32.mrf.mxu0
      %v528 = vadd.f32 %v242, %v527
      %529 = vmatmul.f32.gmra.mxu0 %v318
      %v530 = vpop.f32.mrf.mxu0
      %v531 = vadd.f32 %v242, %v530
      %532 = vmatmul.f32.gmra.mxu0 %v321
      %v533 = vpop.f32.mrf.mxu0
      %v534 = vadd.f32 %v242, %v533
      %535 = vmatmul.f32.gmra.mxu0 %v324
      %v536 = vpop.f32.mrf.mxu0
      %v537 = vadd.f32 %v242, %v536
      %538 = vmatmul.f32.gmra.mxu0 %v327
      %v539 = vpop.f32.mrf.mxu0
      %v540 = vadd.f32 %v242, %v539
      %541 = vmatmul.f32.gmra.mxu0 %v330
      %v542 = vpop.f32.mrf.mxu0
      %v543 = vadd.f32 %v242, %v542
      %544 = vmatmul.f32.gmra.mxu0 %v333
      %v545 = vpop.f32.mrf.mxu0
      %v546 = vadd.f32 %v242, %v545
      %547 = vmatmul.f32.gmra.mxu0 %v336
      %v548 = vpop.f32.mrf.mxu0
      %v549 = vadd.f32 %v242, %v548
      %550 = vmatmul.f32.gmra.mxu0 %v339
      %v551 = vpop.f32.mrf.mxu0
      %v552 = vadd.f32 %v242, %v551
      %553 = vmatmul.f32.gmra.mxu0 %v342
      %v554 = vpop.f32.mrf.mxu0
      %v555 = vadd.f32 %v242, %v554
      %556 = vmatmul.f32.gmra.mxu0 %v345
      %v557 = vpop.f32.mrf.mxu0
      %v558 = vadd.f32 %v242, %v557
      %559 = vmatmul.f32.gmra.mxu0 %v348
      %v560 = vpop.f32.mrf.mxu0
      %v561 = vadd.f32 %v242, %v560
      %562 = vmatmul.f32.gmra.mxu0 %v351
      %v563 = vpop.f32.mrf.mxu0
      %v564 = vadd.f32 %v242, %v563
      %565 = vmatmul.f32.gmra.mxu0 %v354
      %v566 = vpop.f32.mrf.mxu0
      %v567 = vadd.f32 %v242, %v566
      %568 = vmatmul.f32.gmra.mxu0 %v357
      %v569 = vpop.f32.mrf.mxu0
      %v570 = vadd.f32 %v242, %v569
      %571 = vmatmul.f32.gmra.mxu0 %v360
      %v572 = vpop.f32.mrf.mxu0
      %v573 = vadd.f32 %v242, %v572
      %574 = vmatmul.f32.gmra.mxu0 %v363
      %v575 = vpop.f32.mrf.mxu0
      %v576 = vadd.f32 %v242, %v575
      %577 = vmatmul.f32.gmra.mxu0 %v366
      %v578 = vpop.f32.mrf.mxu0
      %v579 = vadd.f32 %v242, %v578
      %580 = vmatmul.f32.gmra.mxu0 %v369
      %v581 = vpop.f32.mrf.mxu0
      %v582 = vadd.f32 %v242, %v581
      %583 = vmatmul.f32.gmra.mxu0 %v372
      %v584 = vpop.f32.mrf.mxu0
      %v585 = vadd.f32 %v242, %v584
      %586 = vmatmul.f32.gmra.mxu0 %v375
      %v587 = vpop.f32.mrf.mxu0
      %v588 = vadd.f32 %v242, %v587
      %589 = vmatmul.f32.gmra.mxu0 %v378
      %v590 = vpop.f32.mrf.mxu0
      %v591 = vadd.f32 %v242, %v590
      %592 = vmatmul.f32.gmra.mxu0 %v381
      %v593 = vpop.f32.mrf.mxu0
      %v594 = vadd.f32 %v242, %v593
      %595 = vmatmul.f32.gmra.mxu0 %v384
      %v596 = vpop.f32.mrf.mxu0
      %v597 = vadd.f32 %v242, %v596
      %598 = vmatmul.f32.gmra.mxu0 %v387
      %v599 = vpop.f32.mrf.mxu0
      %v600 = vadd.f32 %v242, %v599
      %601 = vmatmul.f32.gmra.mxu0 %v390
      %v602 = vpop.f32.mrf.mxu0
      %v603 = vadd.f32 %v242, %v602
      %604 = vmatmul.f32.gmra.mxu0 %v393
      %v605 = vpop.f32.mrf.mxu0
      %v606 = vadd.f32 %v242, %v605
      %607 = vmatmul.f32.gmra.mxu0 %v396
      %v608 = vpop.f32.mrf.mxu0
      %v609 = vadd.f32 %v242, %v608
      %610 = vmatmul.f32.gmra.mxu0 %v399
      %v611 = vpop.f32.mrf.mxu0
      %v612 = vadd.f32 %v242, %v611
      %613 = vmatmul.f32.gmra.mxu0 %v402
      %v614 = vpop.f32.mrf.mxu0
      %v615 = vadd.f32 %v242, %v614
      %616 = vmatmul.f32.gmra.mxu0 %v405
      %v617 = vpop.f32.mrf.mxu0
      %v618 = vadd.f32 %v242, %v617
      %619 = vmatmul.f32.gmra.mxu0 %v408
      %v620 = vpop.f32.mrf.mxu0
      %v621 = vadd.f32 %v242, %v620
      %622 = vmatmul.f32.gmra.mxu0 %v411
      %v623 = vpop.f32.mrf.mxu0
      %v624 = vadd.f32 %v242, %v623
      %625 = vmatmul.f32.gmra.mxu0 %v414
      %v626 = vpop.f32.mrf.mxu0
      %v627 = vadd.f32 %v242, %v626
      %628 = vmatmul.f32.gmra.mxu0 %v417
      %v629 = vpop.f32.mrf.mxu0
      %v630 = vadd.f32 %v242, %v629
      %631 = vmatmul.f32.gmra.mxu0 %v420
      %v632 = vpop.f32.mrf.mxu0
      %v633 = vadd.f32 %v242, %v632
      %634 = vmatmul.f32.gmra.mxu0 %v423
      %v635 = vpop.f32.mrf.mxu0
      %v636 = vadd.f32 %v242, %v635
      %637 = vmatmul.f32.gmra.mxu0 %v426
      %v638 = vpop.f32.mrf.mxu0
      %v639 = vadd.f32 %v242, %v638
      %640 = vmatmul.f32.gmra.mxu0 %v429
      %v641 = vpop.f32.mrf.mxu0
      %v642 = vadd.f32 %v242, %v641
      %643 = vmatmul.f32.gmra.mxu0 %v432
      %v644 = vpop.f32.mrf.mxu0
      %v645 = vadd.f32 %v242, %v644
      %646 = vmatmul.f32.gmra.mxu0 %v435
      %v647 = vpop.f32.mrf.mxu0
      %v648 = vadd.f32 %v242, %v647
      %649 = vdwg.mxu0
      %vm650 = vcmask 15360
      %651 = vst.msk [vmem:[%s172] sm:$0xff] %vm650, %v459
      %652 = vst.msk [vmem:[%s172 + $0x8] sm:$0xff] %vm650, %v462
      %653 = vst.msk [vmem:[%s172 + $0x10] sm:$0xff] %vm650, %v465
      %654 = vst.msk [vmem:[%s172 + $0x18] sm:$0xff] %vm650, %v468
      %655 = vst.msk [vmem:[%s172 + $0x20] sm:$0xff] %vm650, %v471
      %656 = vst.msk [vmem:[%s172 + $0x28] sm:$0xff] %vm650, %v474
      %657 = vst.msk [vmem:[%s172 + $0x30] sm:$0xff] %vm650, %v477
      %658 = vst.msk [vmem:[%s172 + $0x38] sm:$0xff] %vm650, %v480
      %659 = vst.msk [vmem:[%s172 + $0x40] sm:$0xff] %vm650, %v483
      %660 = vst.msk [vmem:[%s172 + $0x48] sm:$0xff] %vm650, %v486
      %661 = vst.msk [vmem:[%s172 + $0x50] sm:$0xff] %vm650, %v489
      %662 = vst.msk [vmem:[%s172 + $0x58] sm:$0xff] %vm650, %v492
      %663 = vst.msk [vmem:[%s172 + $0x60] sm:$0xff] %vm650, %v495
      %664 = vst.msk [vmem:[%s172 + $0x68] sm:$0xff] %vm650, %v498
      %665 = vst.msk [vmem:[%s172 + $0x70] sm:$0xff] %vm650, %v501
      %666 = vst.msk [vmem:[%s172 + $0x78] sm:$0xff] %vm650, %v504
      %667 = vst.msk [vmem:[%s172 + $0x80] sm:$0xff] %vm650, %v507
      %668 = vst.msk [vmem:[%s172 + $0x88] sm:$0xff] %vm650, %v510
      %669 = vst.msk [vmem:[%s172 + $0x90] sm:$0xff] %vm650, %v513
      %670 = vst.msk [vmem:[%s172 + $0x98] sm:$0xff] %vm650, %v516
      %671 = vst.msk [vmem:[%s172 + $0xa0] sm:$0xff] %vm650, %v519
      %672 = vst.msk [vmem:[%s172 + $0xa8] sm:$0xff] %vm650, %v522
      %673 = vst.msk [vmem:[%s172 + $0xb0] sm:$0xff] %vm650, %v525
      %674 = vst.msk [vmem:[%s172 + $0xb8] sm:$0xff] %vm650, %v528
      %675 = vst.msk [vmem:[%s172 + $0xc0] sm:$0xff] %vm650, %v531
      %676 = vst.msk [vmem:[%s172 + $0xc8] sm:$0xff] %vm650, %v534
      %677 = vst.msk [vmem:[%s172 + $0xd0] sm:$0xff] %vm650, %v537
      %678 = vst.msk [vmem:[%s172 + $0xd8] sm:$0xff] %vm650, %v540
      %679 = vst.msk [vmem:[%s172 + $0xe0] sm:$0xff] %vm650, %v543
      %680 = vst.msk [vmem:[%s172 + $0xe8] sm:$0xff] %vm650, %v546
      %681 = vst.msk [vmem:[%s172 + $0xf0] sm:$0xff] %vm650, %v549
      %682 = vst.msk [vmem:[%s172 + $0xf8] sm:$0xff] %vm650, %v552
      %683 = vst.msk [vmem:[%s172 + $0x100] sm:$0xff] %vm650, %v555
      %684 = vst.msk [vmem:[%s172 + $0x108] sm:$0xff] %vm650, %v558
      %685 = vst.msk [vmem:[%s172 + $0x110] sm:$0xff] %vm650, %v561
      %686 = vst.msk [vmem:[%s172 + $0x118] sm:$0xff] %vm650, %v564
      %687 = vst.msk [vmem:[%s172 + $0x120] sm:$0xff] %vm650, %v567
      %688 = vst.msk [vmem:[%s172 + $0x128] sm:$0xff] %vm650, %v570
      %689 = vst.msk [vmem:[%s172 + $0x130] sm:$0xff] %vm650, %v573
      %690 = vst.msk [vmem:[%s172 + $0x138] sm:$0xff] %vm650, %v576
      %691 = vst.msk [vmem:[%s172 + $0x140] sm:$0xff] %vm650, %v579
      %692 = vst.msk [vmem:[%s172 + $0x148] sm:$0xff] %vm650, %v582
      %693 = vst.msk [vmem:[%s172 + $0x150] sm:$0xff] %vm650, %v585
      %694 = vst.msk [vmem:[%s172 + $0x158] sm:$0xff] %vm650, %v588
      %695 = vst.msk [vmem:[%s172 + $0x160] sm:$0xff] %vm650, %v591
      %696 = vst.msk [vmem:[%s172 + $0x168] sm:$0xff] %vm650, %v594
      %697 = vst.msk [vmem:[%s172 + $0x170] sm:$0xff] %vm650, %v597
      %698 = vst.msk [vmem:[%s172 + $0x178] sm:$0xff] %vm650, %v600
      %699 = vst.msk [vmem:[%s172 + $0x180] sm:$0xff] %vm650, %v603
      %700 = vst.msk [vmem:[%s172 + $0x188] sm:$0xff] %vm650, %v606
      %701 = vst.msk [vmem:[%s172 + $0x190] sm:$0xff] %vm650, %v609
      %702 = vst.msk [vmem:[%s172 + $0x198] sm:$0xff] %vm650, %v612
      %703 = vst.msk [vmem:[%s172 + $0x1a0] sm:$0xff] %vm650, %v615
      %704 = vst.msk [vmem:[%s172 + $0x1a8] sm:$0xff] %vm650, %v618
      %705 = vst.msk [vmem:[%s172 + $0x1b0] sm:$0xff] %vm650, %v621
      %706 = vst.msk [vmem:[%s172 + $0x1b8] sm:$0xff] %vm650, %v624
      %707 = vst.msk [vmem:[%s172 + $0x1c0] sm:$0xff] %vm650, %v627
      %708 = vst.msk [vmem:[%s172 + $0x1c8] sm:$0xff] %vm650, %v630
      %709 = vst.msk [vmem:[%s172 + $0x1d0] sm:$0xff] %vm650, %v633
      %710 = vst.msk [vmem:[%s172 + $0x1d8] sm:$0xff] %vm650, %v636
      %711 = vst.msk [vmem:[%s172 + $0x1e0] sm:$0xff] %vm650, %v639
      %712 = vst.msk [vmem:[%s172 + $0x1e8] sm:$0xff] %vm650, %v642
      %713 = vst.msk [vmem:[%s172 + $0x1f0] sm:$0xff] %vm650, %v645
      %714 = vst.msk [vmem:[%s172 + $0x1f8] sm:$0xff] %vm650, %v648
      %s715 = smul.u32 64, %s14
      %p716 = scmp.lt.s32.totalorder %s715, 127
      %s717 = scalar_select %p716, %s715, 127
      %s718 = smul.addr %s717, 8
      %s719 = scalar_lea.vmem %s3, %s718
      // Predicated region
      $region33: #{tpu_custom_call.1} parent=31 // pred_check
        %p720 = pneg %p100
      $region34: #{tpu_custom_call.1} parent=31 // pred_check_branch
        %722 = sbr.rel (%p720) target = $region36
      $region35: #{tpu_custom_call.1} parent=31 // pred_region
        %s723 = smul.u32 64, %s14
      $region36: #{tpu_custom_call.1} parent=31 // pred_fallthru
        _
    $region32: #{tpu_custom_call.1} parent=5 // pred_fallthru
      _
    %p724 = scmp.le.s32.totalorder 2, %s9
    // Predicated region
    $region37: #{tpu_custom_call.1} parent=5 // pred_check
      %p725 = pneg %p724
    $region38: #{tpu_custom_call.1} parent=5 // pred_check_branch
      %727 = sbr.rel (%p725) target = $region40
    $region39: #{tpu_custom_call.1} parent=5 // pred_region
      %s728 = ssub.s32 %s9, 2
      // Predicated region
      $region41: #{tpu_custom_call.1} parent=39 // pred_check
        %p729 = pneg %p106
      $region42: #{tpu_custom_call.1} parent=39 // pred_check_branch
        %731 = sbr.rel (%p729) target = $region44
      $region43: #{tpu_custom_call.1} parent=39 // pred_region
        %s732 = smul.u32 64, %s15
        %p733 = scmp.lt.s32.totalorder %s732, 127
        %s734 = scalar_select %p733, %s732, 127
        %s735 = smul.addr %s734, 8
        %s736 = scalar_lea.vmem %s3, %s735
      $region44: #{tpu_custom_call.1} parent=39 // pred_fallthru
        _
    $region40: #{tpu_custom_call.1} parent=5 // pred_fallthru
      _
  $region6: #{tpu_custom_call.1} parent=0 // loop_footer
    %s13 = sadd.s32 1, %s9
  $region7: #{tpu_custom_call.1} parent=0 // loop_footer_branch
    %8 = sbr.rel target = $region3
  $region8: #{tpu_custom_call.1} parent=0 // loop_exit
    _

</llo_original>
